<compile_context>
chip_gen: v7x
topology: tpu7x:2x2x1
jax: 0.10.0
libtpu: 0.0.40
codegen_flags: <defaults>
</compile_context>

<pallas_src>
import functools
from typing import NamedTuple

import jax
import jax.numpy as jnp
from jax.experimental import pallas as pl
from jax.experimental.pallas import tpu as pltpu

_MIB = 1024 * 1024


def _round_up(x, m):
    return ((x + m - 1) // m) * m


def _device_kind():
    try:
        return jax.devices()[0].device_kind.lower()
    except Exception:
        return ""


def _tpu_generation():
    kind = _device_kind()
    for g in (7, 6, 5, 4, 3, 2):
        if f"v{g}" in kind or f"tpu{g}" in kind:
            return g
    return 0


def _vmem_capacity_bytes():
    try:
        return int(pltpu.get_tpu_info().vmem_capacity_bytes)
    except Exception:
        # v7x has 64 MiB / TC; v5e/v6e have 128 MiB.
        return 64 * _MIB if _tpu_generation() >= 7 else 128 * _MIB


def _pad_feature(d, gen):
    # v6e/v7x MXU is 2x256x256 -> prefer 256-multiples once past 128.
    if gen >= 6 and d > 128:
        return _round_up(d, 256)
    return _round_up(d, 128)


# ----------------------------------------------------------------------------
# Kernels
# ----------------------------------------------------------------------------
def _mlp_kernel_resident(x_ref, w1_ref, b1_ref, w2_ref, b2_ref, o_ref, *,
                         act_dtype):
    """Both weight matrices VMEM-resident; batch-tiled grid."""
    x = x_ref[...].astype(w1_ref.dtype)                      # MXU dtype (bf16/f32)
    h = jnp.dot(x, w1_ref[...], preferred_element_type=jnp.float32)
    h = jnp.tanh((h + b1_ref[...]).astype(act_dtype))        # bf16 tanh on v6e/v7x
    o = jnp.dot(h.astype(w2_ref.dtype), w2_ref[...],
                preferred_element_type=jnp.float32)
    o_ref[...] = jnp.tanh((o + b2_ref[...]).astype(act_dtype)).astype(o_ref.dtype)


def _mlp_kernel_htiled(x_ref, w1_ref, b1_ref, w2_ref, b2_ref, o_ref, acc_ref, *,
                       act_dtype):
    """Fallback: H tiled as a reduction axis; f32 accumulator in VMEM."""
    @pl.when(pl.program_id(1) == 0)
    def _init():
        acc_ref[...] = jnp.zeros_like(acc_ref)

    x = x_ref[...].astype(w1_ref.dtype)
    h = jnp.dot(x, w1_ref[...], preferred_element_type=jnp.float32)
    h = jnp.tanh((h + b1_ref[...]).astype(act_dtype))
    acc_ref[...] += jnp.dot(h.astype(w2_ref.dtype), w2_ref[...],
                            preferred_element_type=jnp.float32)

    @pl.when(pl.program_id(1) == pl.num_programs(1) - 1)
    def _finalize():
        o_ref[...] = jnp.tanh(
            (acc_ref[...] + b2_ref[...]).astype(act_dtype)).astype(o_ref.dtype)


# ----------------------------------------------------------------------------
# Parameter preparation (done ONCE, not per forward call)
# ----------------------------------------------------------------------------
class PreparedMLP(NamedTuple):
    w1: jax.Array        # (din_p, h_p)    compute dtype
    b1: jax.Array        # (1, h_p)        f32
    w2: jax.Array        # (h_p, dout_p)   compute dtype
    b2: jax.Array        # (1, dout_p)     f32
    dim_in: int
    dim_hidden: int
    dim_out: int


def prepare_mlp_params(w1_t, b1, w2_t, b2, *, compute_dtype=jnp.bfloat16):
    """Pad contraction/output dims to MXU-friendly multiples and cast the
    weights to the MXU dtype. Zero padding is semantics-preserving
    (tanh(0)=0; zero weight rows/cols contribute nothing)."""
    gen = _tpu_generation()
    dim_in, H = w1_t.shape
    dim_out = w2_t.shape[1]
    din_p = _pad_feature(dim_in, gen)
    h_p = _pad_feature(H, gen)
    dout_p = _pad_feature(dim_out, gen)

    def _pad_cast(a, shape, dtype):
        a = a.astype(dtype)
        if a.shape == shape:
            return a
        return jnp.zeros(shape, dtype).at[: a.shape[0], : a.shape[1]].set(a)

    w1_p = _pad_cast(w1_t, (din_p, h_p), compute_dtype)
    b1_p = _pad_cast(b1.reshape(1, H), (1, h_p), jnp.float32)
    w2_p = _pad_cast(w2_t, (h_p, dout_p), compute_dtype)
    b2_p = _pad_cast(b2.reshape(1, dim_out), (1, dout_p), jnp.float32)
    return PreparedMLP(w1_p, b1_p, w2_p, b2_p, dim_in, H, dim_out)


# ----------------------------------------------------------------------------
# Forward
# ----------------------------------------------------------------------------
def mlp_forward(x, params: PreparedMLP, *, tile_b=None, tile_h=None,
                max_resident_weight_bytes=None):
    """Fused MLP forward: tanh(tanh(x @ W1 + b1) @ W2 + b2)."""
    gen = _tpu_generation()
    compute_dtype = params.w1.dtype
    csz = jnp.dtype(compute_dtype).itemsize
    # bf16 bias+tanh only where the VPU/EUP supports it (v6e / v7x).
    act_dtype = compute_dtype if (compute_dtype == jnp.bfloat16 and gen >= 6) \
        else jnp.float32
    act_sz = jnp.dtype(act_dtype).itemsize

    B, dim_in = x.shape
    if dim_in != params.dim_in:
        raise ValueError("x feature dim does not match prepared params")
    din_p, h_p = params.w1.shape
    dout_p = params.w2.shape[1]
    out_dtype = x.dtype
    osz = jnp.dtype(out_dtype).itemsize

    # x: pad features only if needed; otherwise pass untouched (cast in-kernel).
    if dim_in != din_p:
        x_in = jnp.zeros((B, din_p), compute_dtype).at[:, :dim_in].set(
            x.astype(compute_dtype))
    else:
        x_in = x
    xsz = jnp.dtype(x_in.dtype).itemsize

    # VMEM budgets (v7x: 64 MiB phys; v5e/v6e: 128 MiB; scoped default is only
    # 32 MiB so raise vmem_limit_bytes explicitly).
    phys_vmem = _vmem_capacity_bytes()
    vmem_limit = int(phys_vmem * 0.8)
    budget = int(vmem_limit * 0.9)

    w_bytes = (params.w1.nbytes + params.b1.nbytes
               + params.w2.nbytes + params.b2.nbytes)
    if max_resident_weight_bytes is None:
        max_resident_weight_bytes = budget // 3

    sub = 16 if csz == 2 else 8   # dtype-correct sublane multiple

    args = (x_in, params.w1, params.b1, params.w2, params.b2)
    kernel_resident = functools.partial(_mlp_kernel_resident, act_dtype=act_dtype)
    kernel_htiled = functools.partial(_mlp_kernel_htiled, act_dtype=act_dtype)

    if w_bytes <= max_resident_weight_bytes:
        # -------- fast path: weights resident, batch-tiled pipelined grid ----
        if tile_b is None:
            avail = budget - 2 * w_bytes        # conservative (double-buffer) bound
            row_bytes = (2 * din_p * xsz + 2 * dout_p * osz
                         + h_p * (4 + act_sz) + dout_p * 4)
            tile_b = max(sub, avail // row_bytes)
        tile_b = int(min(tile_b, 1024))
        if gen >= 7 and B > 2 * sub:
            # v7x megacore: make sure both TensorCores get >= 1 grid step.
            tile_b = min(tile_b, _round_up(-(-B // 2), sub))
        tile_b = max(sub, (tile_b // sub) * sub)
        if tile_b >= B:
            tile_b = B                          # full-dim block is always legal
        grid = (pl.cdiv(B, tile_b),)

        def _call(single_buffer_weights):
            def wspec(shape):
                if single_buffer_weights:
                    return pl.BlockSpec(shape, lambda i: (0,) * len(shape),
                                        pipeline_mode=pl.Buffered(1))
                return pl.BlockSpec(shape, lambda i: (0,) * len(shape))

            return pl.pallas_call(
                kernel_resident,
                out_shape=jax.ShapeDtypeStruct((B, dout_p), out_dtype),
                grid_spec=pl.GridSpec(
                    grid=grid,
                    in_specs=[
                        # x: batch-tiled, double-buffered by the pipeline.
                        pl.BlockSpec((tile_b, din_p), lambda i: (i, 0)),
                        # Weights / biases: constant block -> VMEM-resident.
                        wspec((din_p, h_p)),
                        wspec((1, h_p)),
                        wspec((h_p, dout_p)),
                        wspec((1, dout_p)),
                    ],
                    out_specs=pl.BlockSpec((tile_b, dout_p), lambda i: (i, 0)),
                ),
                compiler_params=pltpu.CompilerParams(
                    dimension_semantics=("parallel",),
                    vmem_limit_bytes=vmem_limit),
            )(*args)

        try:
            out_p = _call(True)     # single-buffered resident weights
        except Exception:
            out_p = _call(False)    # fallback: default double-buffering
    else:
        # -------- fallback: H-tiled reduction with f32 accumulator -----------
        h_align = 256 if gen >= 6 else 128
        if tile_b is None:
            tile_b = 512
        tile_b = max(sub, (int(min(tile_b, 1024)) // sub) * sub)
        if tile_b >= B:
            tile_b = B
        if tile_h is None:
            per_h = 2 * (din_p + dout_p) * csz + 2 * 4 + tile_b * (4 + act_sz)
            fixed = (2 * tile_b * din_p * xsz + 2 * tile_b * dout_p * osz
                     + tile_b * dout_p * 4 + 2 * dout_p * 4)
            tile_h = max(h_align, (budget - fixed) // max(per_h, 1))
        tile_h = max(h_align, (int(min(tile_h, h_p)) // h_align) * h_align)
        if tile_h >= h_p:
            tile_h = h_p
        grid = (pl.cdiv(B, tile_b), pl.cdiv(h_p, tile_h))

        out_p = pl.pallas_call(
            kernel_htiled,
            out_shape=jax.ShapeDtypeStruct((B, dout_p), out_dtype),
            grid_spec=pltpu.PrefetchScalarGridSpec(
                num_scalar_prefetch=0,
                grid=grid,
                in_specs=[
                    pl.BlockSpec((tile_b, din_p), lambda i, k: (i, 0)),
                    pl.BlockSpec((din_p, tile_h), lambda i, k: (0, k)),
                    pl.BlockSpec((1, tile_h), lambda i, k: (0, k)),
                    pl.BlockSpec((tile_h, dout_p), lambda i, k: (k, 0)),
                    pl.BlockSpec((1, dout_p), lambda i, k: (0, 0)),
                ],
                out_specs=pl.BlockSpec((tile_b, dout_p), lambda i, k: (i, 0)),
                scratch_shapes=[pltpu.VMEM((tile_b, dout_p), jnp.float32)],
            ),
            compiler_params=pltpu.CompilerParams(
                dimension_semantics=("parallel", "arbitrary"),
                vmem_limit_bytes=vmem_limit),
        )(*args)

    # Slice away padded output lanes.
    return out_p[:, :params.dim_out]


# ----------------------------------------------------------------------------
# Param init mirroring torch.nn.Linear, and an f32 reference
# ----------------------------------------------------------------------------
def init_mlp_params(key, num_hidden, dim_in, dim_out, dtype=jnp.float32):
    """U(-1/sqrt(fan_in), 1/sqrt(fan_in)) like torch.nn.Linear; weights kept
    transposed (in, out) so the kernel runs x @ W directly on the MXU."""
    k1, k2, k3, k4 = jax.random.split(key, 4)
    bound1 = 1.0 / (dim_in ** 0.5)
    bound2 = 1.0 / (num_hidden ** 0.5)
    w1_t = jax.random.uniform(k1, (dim_in, num_hidden), dtype, -bound1, bound1)
    b1 = jax.random.uniform(k2, (1, num_hidden), dtype, -bound1, bound1)
    w2_t = jax.random.uniform(k3, (num_hidden, dim_out), dtype, -bound2, bound2)
    b2 = jax.random.uniform(k4, (1, dim_out), dtype, -bound2, bound2)
    return w1_t, b1, w2_t, b2


def _reference(x, w1_t, b1, w2_t, b2):
    return jnp.tanh(jnp.tanh(x @ w1_t + b1) @ w2_t + b2)


if __name__ == "__main__":
    key = jax.random.PRNGKey(0)
    k1, k2, k3, k4, k5, k6 = jax.random.split(key, 6)

    # --- 1) Spec shapes: MLP(num_hidden=32, dim_in=16, dim_out=8), batch=8,
    #        exact f32 path (compute_dtype=f32 -> f32 MXU, f32 tanh) ----------
    batch, dim_in, num_hidden, dim_out = 8, 16, 32, 8
    x = jax.random.normal(k1, (batch, dim_in), jnp.float32)
    raw = init_mlp_params(k2, num_hidden, dim_in, dim_out)
    params_f32 = prepare_mlp_params(*raw, compute_dtype=jnp.float32)

    out = jax.block_until_ready(mlp_forward(x, params_f32))
    ref = _reference(x, *raw)
    assert out.shape == (batch, dim_out)
    assert jnp.allclose(out, ref, atol=1e-5, rtol=1e-5), "f32 path mismatch"

    # --- 2) Larger batch, default bf16 MXU (+ bf16 tanh on v6e/v7x),
    #        resident-weight batch-tiled path -------------------------------
    B2, DIN2, H2, DOUT2 = 512, 256, 512, 128
    x2 = jax.random.normal(k3, (B2, DIN2), jnp.float32)
    raw2 = init_mlp_params(k4, H2, DIN2, DOUT2)
    params2 = prepare_mlp_params(*raw2)          # bf16 default
    out2 = jax.block_until_ready(mlp_forward(x2, params2))
    ref2 = _reference(x2, *raw2)
    assert out2.shape == (B2, DOUT2)
    assert jnp.allclose(out2, ref2, atol=5e-2, rtol=5e-2), "bf16 path mismatch"

    # --- 3) H-tiled accumulator fallback (forced), multi-step 2D grid --------
    B3, DIN3, H3, DOUT3 = 256, 256, 1024, 256
    x3 = jax.random.normal(k5, (B3, DIN3), jnp.float32)
    raw3 = init_mlp_params(k6, H3, DIN3, DOUT3)
    params3 = prepare_mlp_params(*raw3)          # bf16 default
    out3 = jax.block_until_ready(
        mlp_forward(x3, params3, tile_b=128, tile_h=256,
                    max_resident_weight_bytes=0))
    ref3 = _reference(x3, *raw3)
    assert out3.shape == (B3, DOUT3)
    assert jnp.allclose(out3, ref3, atol=5e-2, rtol=5e-2), "h-tiled path mismatch"

    print("KERNEL_OK")
</pallas_src>

<mosaic_0001>
module attributes {stable_mosaic.version = 11 : i64} {
  func.func @_mlp_kernel_resident(%arg0: i32, %arg1: memref<8x128xf32, #tpu.memory_space<vmem>>, %arg2: memref<128x128xf32, #tpu.memory_space<vmem>>, %arg3: memref<1x128xf32, #tpu.memory_space<vmem>>, %arg4: memref<128x128xf32, #tpu.memory_space<vmem>>, %arg5: memref<1x128xf32, #tpu.memory_space<vmem>>, %arg6: memref<8x128xf32, #tpu.memory_space<vmem>>) attributes {dimension_semantics = [#tpu.dimension_semantics<parallel>], iteration_bounds = array<i64: 1>, scalar_prefetch = 0 : i64, scratch_operands = 0 : i64, tpu.core_type = #tpu.core_type<tc>, window_params = [{transform_indices = @transform_0, window_bounds = array<i64: 8, 128>}, {pipeline_mode = #tpu.pipeline_mode<synchronous>, transform_indices = @transform_1, window_bounds = array<i64: 128, 128>}, {pipeline_mode = #tpu.pipeline_mode<synchronous>, transform_indices = @transform_2, window_bounds = array<i64: 1, 128>}, {pipeline_mode = #tpu.pipeline_mode<synchronous>, transform_indices = @transform_3, window_bounds = array<i64: 128, 128>}, {pipeline_mode = #tpu.pipeline_mode<synchronous>, transform_indices = @transform_4, window_bounds = array<i64: 1, 128>}, {transform_indices = @transform_5, window_bounds = array<i64: 8, 128>}]} {
    %c0 = arith.constant 0 : index
    %c0_0 = arith.constant 0 : index
    %0 = vector.load %arg1[%c0, %c0_0] : memref<8x128xf32, #tpu.memory_space<vmem>>, vector<8x128xf32>
    %c0_1 = arith.constant 0 : index
    %c0_2 = arith.constant 0 : index
    %1 = vector.load %arg2[%c0_1, %c0_2] : memref<128x128xf32, #tpu.memory_space<vmem>>, vector<128x128xf32>
    %cst = arith.constant dense<0.000000e+00> : vector<8x128xf32>
    %2 = tpu.matmul %0, %1, %cst {dimension_numbers = #tpu.dot_dimension_numbers<[1], [0], [0], [1], [0, 0, 1, 1], [], []>} : vector<8x128xf32>, vector<128x128xf32>, vector<8x128xf32> -> vector<8x128xf32>
    %c0_3 = arith.constant 0 : index
    %c0_4 = arith.constant 0 : index
    %3 = vector.load %arg3[%c0_3, %c0_4] : memref<1x128xf32, #tpu.memory_space<vmem>>, vector<1x128xf32>
    %4 = vector.broadcast %3 : vector<1x128xf32> to vector<8x128xf32>
    %5 = arith.addf %2, %4 : vector<8x128xf32>
    %6 = math.tanh %5 : vector<8x128xf32>
    %c0_5 = arith.constant 0 : index
    %c0_6 = arith.constant 0 : index
    %7 = vector.load %arg4[%c0_5, %c0_6] : memref<128x128xf32, #tpu.memory_space<vmem>>, vector<128x128xf32>
    %cst_7 = arith.constant dense<0.000000e+00> : vector<8x128xf32>
    %8 = tpu.matmul %6, %7, %cst_7 {dimension_numbers = #tpu.dot_dimension_numbers<[1], [0], [0], [1], [0, 0, 1, 1], [], []>} : vector<8x128xf32>, vector<128x128xf32>, vector<8x128xf32> -> vector<8x128xf32>
    %c0_8 = arith.constant 0 : index
    %c0_9 = arith.constant 0 : index
    %9 = vector.load %arg5[%c0_8, %c0_9] : memref<1x128xf32, #tpu.memory_space<vmem>>, vector<1x128xf32>
    %10 = vector.broadcast %9 : vector<1x128xf32> to vector<8x128xf32>
    %11 = arith.addf %8, %10 : vector<8x128xf32>
    %12 = math.tanh %11 : vector<8x128xf32>
    %c0_10 = arith.constant 0 : index
    %c0_11 = arith.constant 0 : index
    %13 = vector.load %arg6[%c0_10, %c0_11] : memref<8x128xf32, #tpu.memory_space<vmem>>, vector<8x128xf32>
    tpu.vector_store %arg6[%c0_10, %c0_11], %12 {strides = array<i32>} : memref<8x128xf32, #tpu.memory_space<vmem>>, vector<8x128xf32>,
    return
  }
  func.func @transform_0(%arg0: i32) -> (i32, i32) {
    %c0_i32 = arith.constant 0 : i32
    %c0_i32_0 = arith.constant 0 : i32
    return %arg0, %c0_i32 : i32, i32
  }
  func.func @transform_1(%arg0: i32) -> (i32, i32) {
    %c0_i32 = arith.constant 0 : i32
    %c0_i32_0 = arith.constant 0 : i32
    %c0_i32_1 = arith.constant 0 : i32
    return %c0_i32, %c0_i32_0 : i32, i32
  }
  func.func @transform_2(%arg0: i32) -> (i32, i32) {
    %c0_i32 = arith.constant 0 : i32
    %c0_i32_0 = arith.constant 0 : i32
    %c0_i32_1 = arith.constant 0 : i32
    return %c0_i32, %c0_i32_0 : i32, i32
  }
  func.func @transform_3(%arg0: i32) -> (i32, i32) {
    %c0_i32 = arith.constant 0 : i32
    %c0_i32_0 = arith.constant 0 : i32
    %c0_i32_1 = arith.constant 0 : i32
    return %c0_i32, %c0_i32_0 : i32, i32
  }
  func.func @transform_4(%arg0: i32) -> (i32, i32) {
    %c0_i32 = arith.constant 0 : i32
    %c0_i32_0 = arith.constant 0 : i32
    %c0_i32_1 = arith.constant 0 : i32
    return %c0_i32, %c0_i32_0 : i32, i32
  }
  func.func @transform_5(%arg0: i32) -> (i32, i32) {
    %c0_i32 = arith.constant 0 : i32
    %c0_i32_0 = arith.constant 0 : i32
    return %arg0, %c0_i32 : i32, i32
  }
}

module attributes {stable_mosaic.version = 11 : i64} {
  func.func @_mlp_kernel_resident(%arg0: i32, %arg1: memref<8x128xf32, #tpu.memory_space<vmem>>, %arg2: memref<128x128xf32, #tpu.memory_space<vmem>>, %arg3: memref<1x128xf32, #tpu.memory_space<vmem>>, %arg4: memref<128x128xf32, #tpu.memory_space<vmem>>, %arg5: memref<1x128xf32, #tpu.memory_space<vmem>>, %arg6: memref<8x128xf32, #tpu.memory_space<vmem>>) attributes {dimension_semantics = [#tpu.dimension_semantics<parallel>], iteration_bounds = array<i64: 1>, scalar_prefetch = 0 : i64, scratch_operands = 0 : i64, tpu.core_type = #tpu.core_type<tc>, window_params = [{transform_indices = @transform_0, window_bounds = array<i64: 8, 128>}, {pipeline_mode = #tpu.pipeline_mode<synchronous>, transform_indices = @transform_1, window_bounds = array<i64: 128, 128>}, {pipeline_mode = #tpu.pipeline_mode<synchronous>, transform_indices = @transform_2, window_bounds = array<i64: 1, 128>}, {pipeline_mode = #tpu.pipeline_mode<synchronous>, transform_indices = @transform_3, window_bounds = array<i64: 128, 128>}, {pipeline_mode = #tpu.pipeline_mode<synchronous>, transform_indices = @transform_4, window_bounds = array<i64: 1, 128>}, {transform_indices = @transform_5, window_bounds = array<i64: 8, 128>}]} {
    %c0 = arith.constant 0 : index
    %c0_0 = arith.constant 0 : index
    %0 = vector.load %arg1[%c0, %c0_0] : memref<8x128xf32, #tpu.memory_space<vmem>>, vector<8x128xf32>
    %c0_1 = arith.constant 0 : index
    %c0_2 = arith.constant 0 : index
    %1 = vector.load %arg2[%c0_1, %c0_2] : memref<128x128xf32, #tpu.memory_space<vmem>>, vector<128x128xf32>
    %cst = arith.constant dense<0.000000e+00> : vector<8x128xf32>
    %2 = tpu.matmul %0, %1, %cst {dimension_numbers = #tpu.dot_dimension_numbers<[1], [0], [0], [1], [0, 0, 1, 1], [], []>} : vector<8x128xf32>, vector<128x128xf32>, vector<8x128xf32> -> vector<8x128xf32>
    %c0_3 = arith.constant 0 : index
    %c0_4 = arith.constant 0 : index
    %3 = vector.load %arg3[%c0_3, %c0_4] : memref<1x128xf32, #tpu.memory_space<vmem>>, vector<1x128xf32>
    %4 = vector.broadcast %3 : vector<1x128xf32> to vector<8x128xf32>
    %5 = arith.addf %2, %4 : vector<8x128xf32>
    %6 = math.tanh %5 : vector<8x128xf32>
    %c0_5 = arith.constant 0 : index
    %c0_6 = arith.constant 0 : index
    %7 = vector.load %arg4[%c0_5, %c0_6] : memref<128x128xf32, #tpu.memory_space<vmem>>, vector<128x128xf32>
    %cst_7 = arith.constant dense<0.000000e+00> : vector<8x128xf32>
    %8 = tpu.matmul %6, %7, %cst_7 {dimension_numbers = #tpu.dot_dimension_numbers<[1], [0], [0], [1], [0, 0, 1, 1], [], []>} : vector<8x128xf32>, vector<128x128xf32>, vector<8x128xf32> -> vector<8x128xf32>
    %c0_8 = arith.constant 0 : index
    %c0_9 = arith.constant 0 : index
    %9 = vector.load %arg5[%c0_8, %c0_9] : memref<1x128xf32, #tpu.memory_space<vmem>>, vector<1x128xf32>
    %10 = vector.broadcast %9 : vector<1x128xf32> to vector<8x128xf32>
    %11 = arith.addf %8, %10 : vector<8x128xf32>
    %12 = math.tanh %11 : vector<8x128xf32>
    %c0_10 = arith.constant 0 : index
    %c0_11 = arith.constant 0 : index
    %13 = vector.load %arg6[%c0_10, %c0_11] : memref<8x128xf32, #tpu.memory_space<vmem>>, vector<8x128xf32>
    tpu.vector_store %arg6[%c0_10, %c0_11], %12 {strides = array<i32>} : memref<8x128xf32, #tpu.memory_space<vmem>>, vector<8x128xf32>,
    return
  }
  func.func @transform_0(%arg0: i32) -> (i32, i32) {
    %c0_i32 = arith.constant 0 : i32
    %c0_i32_0 = arith.constant 0 : i32
    return %arg0, %c0_i32 : i32, i32
  }
  func.func @transform_1(%arg0: i32) -> (i32, i32) {
    %c0_i32 = arith.constant 0 : i32
    %c0_i32_0 = arith.constant 0 : i32
    %c0_i32_1 = arith.constant 0 : i32
    return %c0_i32, %c0_i32_0 : i32, i32
  }
  func.func @transform_2(%arg0: i32) -> (i32, i32) {
    %c0_i32 = arith.constant 0 : i32
    %c0_i32_0 = arith.constant 0 : i32
    %c0_i32_1 = arith.constant 0 : i32
    return %c0_i32, %c0_i32_0 : i32, i32
  }
  func.func @transform_3(%arg0: i32) -> (i32, i32) {
    %c0_i32 = arith.constant 0 : i32
    %c0_i32_0 = arith.constant 0 : i32
    %c0_i32_1 = arith.constant 0 : i32
    return %c0_i32, %c0_i32_0 : i32, i32
  }
  func.func @transform_4(%arg0: i32) -> (i32, i32) {
    %c0_i32 = arith.constant 0 : i32
    %c0_i32_0 = arith.constant 0 : i32
    %c0_i32_1 = arith.constant 0 : i32
    return %c0_i32, %c0_i32_0 : i32, i32
  }
  func.func @transform_5(%arg0: i32) -> (i32, i32) {
    %c0_i32 = arith.constant 0 : i32
    %c0_i32_0 = arith.constant 0 : i32
    return %arg0, %c0_i32 : i32, i32
  }
}

</mosaic_0001>

<llo_original>
// kernel: tpu_custom_call.1
$region0: #{tpu_custom_call.1}
  #allocation0 [shape = 'u32[]', space=smem, size = 0x4, offset = 0x4, fixed_abs, tag = 'smem constant byte address 0x4 - core index']
  #allocation1 [shape = 'u32[144,128]{1,0:T(1,128)}', space=vmem, size = 0x12000, scoped, tag = 'internal scratch']
  %s0 = inlined_call_operand.hbm [shape: f32[8,128], index: 0, kind: input, shape index: {}]
  %s1 = inlined_call_operand.hbm [shape: f32[128,128], index: 1, kind: input, shape index: {}]
  %s2 = inlined_call_operand.hbm [shape: f32[1,128], index: 2, kind: input, shape index: {}]
  %s3 = inlined_call_operand.hbm [shape: f32[128,128], index: 3, kind: input, shape index: {}]
  %s4 = inlined_call_operand.hbm [shape: f32[1,128], index: 4, kind: input, shape index: {}]
  %s5 = inlined_call_operand.hbm [shape: f32[8,128], index: 5, kind: output, shape index: {}]
  %s6 = sld [smem:[#allocation0]]
  $region50: #{tpu_custom_call.1} parent=0
    _
  %s8 = ssub.s32 1, %s6
  %s9 = scalar_select 0, %s8, %s6
  $region1: #{tpu_custom_call.1} parent=0
    #allocation2 [shape = 'u8[4096]{0}', space=vmem, size = 0x1000, scoped, tag = 'input window, operand 0, single buffered']
    #allocation3 [shape = 's32[1]{0}', space=sflag, size = 0x4, scoped, tag = 'scoped memory for tpu_custom_call.1']
    #allocation4 [shape = 's32[1]{0}', space=sflag, size = 0x4, scoped, tag = 'scoped memory for tpu_custom_call.1']
    #allocation5 [shape = 'u8[65536]{0}', space=vmem, size = 0x10000, scoped, tag = 'input window, operand 1, single buffered']
    #allocation6 [shape = 's32[1]{0}', space=sflag, size = 0x4, scoped, tag = 'scoped memory for tpu_custom_call.1']
    #allocation7 [shape = 'u8[512]{0}', space=vmem, size = 0x400, scoped, tag = 'input window, operand 2, single buffered']
    #allocation8 [shape = 'u8[65536]{0}', space=vmem, size = 0x10000, scoped, tag = 'input window, operand 3, single buffered']
    #allocation9 [shape = 's32[1]{0}', space=sflag, size = 0x4, scoped, tag = 'scoped memory for tpu_custom_call.1']
    #allocation10 [shape = 'u8[512]{0}', space=vmem, size = 0x400, scoped, tag = 'input window, operand 4, single buffered']
    #allocation11 [shape = 'u8[4096]{0}', space=vmem, size = 0x1000, scoped, tag = 'output window, operand 0, single buffered']
    %10 = vsyncpa [#allocation3], 0
    %11 = vsyncpa [#allocation6], 0
    %12 = vsyncpa [#allocation9], 0
    %13 = vsyncpa [#allocation4], 0
    // Predicated region
    $region2: #{tpu_custom_call.1} parent=1 // pred_check
      _
    $region3: #{tpu_custom_call.1} parent=1 // pred_check_branch
      %15 = sbr.rel (0) target = $region5
    $region4: #{tpu_custom_call.1} parent=1 // pred_region
      %s17 = ssub.s32 128, 128
      %18 = vsyncadd [#allocation3], %s17
      %s20 = sshll.u32 [#allocation2], 4
      %s21 = int_to_ptr.vmem [resolvable:$true] %s20
      %23 = dma.hbm_to_vmem [thread:$0]  %s0, 128, %s21, [#allocation3]
    $region5: #{tpu_custom_call.1} parent=1 // pred_fallthru
      _
    // Predicated region
    $region6: #{tpu_custom_call.1} parent=1 // pred_check
      _
    $region7: #{tpu_custom_call.1} parent=1 // pred_check_branch
      %25 = sbr.rel (0) target = $region9
    $region8: #{tpu_custom_call.1} parent=1 // pred_region
      %s27 = ssub.s32 2048, 2048
      %28 = vsyncadd [#allocation6], %s27
      %s29 = sshll.u32 [#allocation5], 4
      %s30 = int_to_ptr.vmem [resolvable:$true] %s29
      %35 = dma.hbm_to_vmem [thread:$0]  %s1, 2048, %s30, [#allocation6], 128, 128, 8
    $region9: #{tpu_custom_call.1} parent=1 // pred_fallthru
      _
    // Predicated region
    $region10: #{tpu_custom_call.1} parent=1 // pred_check
      _
    $region11: #{tpu_custom_call.1} parent=1 // pred_check_branch
      %37 = sbr.rel (0) target = $region13
    $region12: #{tpu_custom_call.1} parent=1 // pred_region
      %s39 = ssub.s32 16, 16
      %40 = vsyncadd [#allocation6], %s39
      %s42 = sshll.u32 [#allocation7], 4
      %s43 = int_to_ptr.vmem [resolvable:$true] %s42
      %45 = dma.hbm_to_vmem [thread:$0]  %s2, 16, %s43, [#allocation6]
    $region13: #{tpu_custom_call.1} parent=1 // pred_fallthru
      _
    // Predicated region
    $region14: #{tpu_custom_call.1} parent=1 // pred_check
      _
    $region15: #{tpu_custom_call.1} parent=1 // pred_check_branch
      %47 = sbr.rel (0) target = $region17
    $region16: #{tpu_custom_call.1} parent=1 // pred_region
      %s49 = ssub.s32 2048, 2048
      %50 = vsyncadd [#allocation9], %s49
      %s51 = sshll.u32 [#allocation8], 4
      %s52 = int_to_ptr.vmem [resolvable:$true] %s51
      %57 = dma.hbm_to_vmem [thread:$0]  %s3, 2048, %s52, [#allocation9], 128, 128, 8
    $region17: #{tpu_custom_call.1} parent=1 // pred_fallthru
      _
    // Predicated region
    $region18: #{tpu_custom_call.1} parent=1 // pred_check
      _
    $region19: #{tpu_custom_call.1} parent=1 // pred_check_branch
      %59 = sbr.rel (0) target = $region21
    $region20: #{tpu_custom_call.1} parent=1 // pred_region
      %s61 = ssub.s32 16, 16
      %62 = vsyncadd [#allocation9], %s61
      %s64 = sshll.u32 [#allocation10], 4
      %s65 = int_to_ptr.vmem [resolvable:$true] %s64
      %67 = dma.hbm_to_vmem [thread:$0]  %s4, 16, %s65, [#allocation9]
    $region21: #{tpu_custom_call.1} parent=1 // pred_fallthru
      _
    // Predicated region
    $region22: #{tpu_custom_call.1} parent=1 // pred_check
      _
    $region23: #{tpu_custom_call.1} parent=1 // pred_check_branch
      %69 = sbr.rel (0) target = $region25
    $region24: #{tpu_custom_call.1} parent=1 // pred_region
      %70 = dma.done [#allocation3], 128
    $region25: #{tpu_custom_call.1} parent=1 // pred_fallthru
      _
    // Predicated region
    $region26: #{tpu_custom_call.1} parent=1 // pred_check
      _
    $region27: #{tpu_custom_call.1} parent=1 // pred_check_branch
      %72 = sbr.rel (0) target = $region29
    $region28: #{tpu_custom_call.1} parent=1 // pred_region
      %73 = dma.done [#allocation6], 2048
    $region29: #{tpu_custom_call.1} parent=1 // pred_fallthru
      _
    // Predicated region
    $region30: #{tpu_custom_call.1} parent=1 // pred_check
      _
    $region31: #{tpu_custom_call.1} parent=1 // pred_check_branch
      %75 = sbr.rel (0) target = $region33
    $region32: #{tpu_custom_call.1} parent=1 // pred_region
      %76 = dma.done [#allocation6], 16
    $region33: #{tpu_custom_call.1} parent=1 // pred_fallthru
      _
    // Predicated region
    $region34: #{tpu_custom_call.1} parent=1 // pred_check
      _
    $region35: #{tpu_custom_call.1} parent=1 // pred_check_branch
      %78 = sbr.rel (0) target = $region37
    $region36: #{tpu_custom_call.1} parent=1 // pred_region
      %79 = dma.done [#allocation9], 2048
    $region37: #{tpu_custom_call.1} parent=1 // pred_fallthru
      _
    // Predicated region
    $region38: #{tpu_custom_call.1} parent=1 // pred_check
      _
    $region39: #{tpu_custom_call.1} parent=1 // pred_check_branch
      %81 = sbr.rel (0) target = $region41
    $region40: #{tpu_custom_call.1} parent=1 // pred_region
      %82 = dma.done [#allocation9], 16
    $region41: #{tpu_custom_call.1} parent=1 // pred_fallthru
      _
    %v83 = vld [vmem:[#allocation2] sm:$0xff]
    %v84 = vld [vmem:[#allocation5] sm:$0xff]
    %v85 = vld [vmem:[#allocation5 + $0x8] sm:$0xff]
    %v86 = vld [vmem:[#allocation5 + $0x10] sm:$0xff]
    %v87 = vld [vmem:[#allocation5 + $0x18] sm:$0xff]
    %v88 = vld [vmem:[#allocation5 + $0x20] sm:$0xff]
    %v89 = vld [vmem:[#allocation5 + $0x28] sm:$0xff]
    %v90 = vld [vmem:[#allocation5 + $0x30] sm:$0xff]
    %v91 = vld [vmem:[#allocation5 + $0x38] sm:$0xff]
    %v92 = vld [vmem:[#allocation5 + $0x40] sm:$0xff]
    %v93 = vld [vmem:[#allocation5 + $0x48] sm:$0xff]
    %v94 = vld [vmem:[#allocation5 + $0x50] sm:$0xff]
    %v95 = vld [vmem:[#allocation5 + $0x58] sm:$0xff]
    %v96 = vld [vmem:[#allocation5 + $0x60] sm:$0xff]
    %v97 = vld [vmem:[#allocation5 + $0x68] sm:$0xff]
    %v98 = vld [vmem:[#allocation5 + $0x70] sm:$0xff]
    %v99 = vld [vmem:[#allocation5 + $0x78] sm:$0xff]
    %v100 = vld [vmem:[#allocation7] sm:$0x1]
    %v102 = vlaneseq
    %v103 = vshrl.u32 %v102, 7
    %v104 = vsub.s32 0, %v103
    %v105 = vrot.slane %v100, %v104
    %107 = vmatprep.subr.mxu0 0.0
    %108 = vmatpush1.msra.mxu0 %v84
    %109 = vmatprep.subr.mxu0 0.0
    %110 = vmatpush1.msra.mxu0 %v85
    %111 = vmatprep.subr.mxu0 0.0
    %112 = vmatpush1.msra.mxu0 %v86
    %113 = vmatprep.subr.mxu0 0.0
    %114 = vmatpush1.msra.mxu0 %v87
    %115 = vmatprep.subr.mxu0 0.0
    %116 = vmatpush1.msra.mxu0 %v88
    %117 = vmatprep.subr.mxu0 0.0
    %118 = vmatpush1.msra.mxu0 %v89
    %119 = vmatprep.subr.mxu0 0.0
    %120 = vmatpush1.msra.mxu0 %v90
    %121 = vmatprep.subr.mxu0 0.0
    %122 = vmatpush1.msra.mxu0 %v91
    %123 = vmatprep.subr.mxu0 0.0
    %124 = vmatpush1.msra.mxu0 %v92
    %125 = vmatprep.subr.mxu0 0.0
    %126 = vmatpush1.msra.mxu0 %v93
    %127 = vmatprep.subr.mxu0 0.0
    %128 = vmatpush1.msra.mxu0 %v94
    %129 = vmatprep.subr.mxu0 0.0
    %130 = vmatpush1.msra.mxu0 %v95
    %131 = vmatprep.subr.mxu0 0.0
    %132 = vmatpush1.msra.mxu0 %v96
    %133 = vmatprep.subr.mxu0 0.0
    %134 = vmatpush1.msra.mxu0 %v97
    %135 = vmatprep.subr.mxu0 0.0
    %136 = vmatpush1.msra.mxu0 %v98
    %137 = vmatprep.subr.mxu0 0.0
    %138 = vmatpush1.msra.mxu0 %v99
    %139 = vmatprep.subr.mxu0 0.0
    %140 = vmatpush1.msra.mxu0 0.0
    %141 = vmatprep.subr.mxu0 0.0
    %142 = vmatpush1.msra.mxu0 0.0
    %143 = vmatprep.subr.mxu0 0.0
    %144 = vmatpush1.msra.mxu0 0.0
    %145 = vmatprep.subr.mxu0 0.0
    %146 = vmatpush1.msra.mxu0 0.0
    %147 = vmatprep.subr.mxu0 0.0
    %148 = vmatpush1.msra.mxu0 0.0
    %149 = vmatprep.subr.mxu0 0.0
    %150 = vmatpush1.msra.mxu0 0.0
    %151 = vmatprep.subr.mxu0 0.0
    %152 = vmatpush1.msra.mxu0 0.0
    %153 = vmatprep.subr.mxu0 0.0
    %154 = vmatpush1.msra.mxu0 0.0
    %155 = vmatprep.subr.mxu0 0.0
    %156 = vmatpush1.msra.mxu0 0.0
    %157 = vmatprep.subr.mxu0 0.0
    %158 = vmatpush1.msra.mxu0 0.0
    %159 = vmatprep.subr.mxu0 0.0
    %160 = vmatpush1.msra.mxu0 0.0
    %161 = vmatprep.subr.mxu0 0.0
    %162 = vmatpush1.msra.mxu0 0.0
    %163 = vmatprep.subr.mxu0 0.0
    %164 = vmatpush1.msra.mxu0 0.0
    %165 = vmatprep.subr.mxu0 0.0
    %166 = vmatpush1.msra.mxu0 0.0
    %167 = vmatprep.subr.mxu0 0.0
    %168 = vmatpush1.msra.mxu0 0.0
    %169 = vmatprep.subr.mxu0 0.0
    %170 = vmatpush1.msra.mxu0 0.0
    %171 = vmatprep.mubr.f32.mxu0 0.0
    %172 = vmatmul.mubr.f32.gmra.mrb[0].mxu0 %v83
    %v173 = vpop.f32.mrb[0].mxu0
    %v174 = vadd.f32 %v105, %v173
    %v175 = vpop.f32.mrb[0].mxu0
    %176 = vdwg.mxu0
    %v177 = vtanh.pop %v174
    %v178 = vld [vmem:[#allocation8] sm:$0xff]
    %v179 = vld [vmem:[#allocation8 + $0x8] sm:$0xff]
    %v180 = vld [vmem:[#allocation8 + $0x10] sm:$0xff]
    %v181 = vld [vmem:[#allocation8 + $0x18] sm:$0xff]
    %v182 = vld [vmem:[#allocation8 + $0x20] sm:$0xff]
    %v183 = vld [vmem:[#allocation8 + $0x28] sm:$0xff]
    %v184 = vld [vmem:[#allocation8 + $0x30] sm:$0xff]
    %v185 = vld [vmem:[#allocation8 + $0x38] sm:$0xff]
    %v186 = vld [vmem:[#allocation8 + $0x40] sm:$0xff]
    %v187 = vld [vmem:[#allocation8 + $0x48] sm:$0xff]
    %v188 = vld [vmem:[#allocation8 + $0x50] sm:$0xff]
    %v189 = vld [vmem:[#allocation8 + $0x58] sm:$0xff]
    %v190 = vld [vmem:[#allocation8 + $0x60] sm:$0xff]
    %v191 = vld [vmem:[#allocation8 + $0x68] sm:$0xff]
    %v192 = vld [vmem:[#allocation8 + $0x70] sm:$0xff]
    %v193 = vld [vmem:[#allocation8 + $0x78] sm:$0xff]
    %v194 = vld [vmem:[#allocation10] sm:$0x1]
    %v196 = vlaneseq
    %v197 = vshrl.u32 %v196, 7
    %v198 = vsub.s32 0, %v197
    %v199 = vrot.slane %v194, %v198
    %201 = vmatprep.subr.mxu0 0.0
    %202 = vmatpush1.msra.mxu0 %v178
    %203 = vmatprep.subr.mxu0 0.0
    %204 = vmatpush1.msra.mxu0 %v179
    %205 = vmatprep.subr.mxu0 0.0
    %206 = vmatpush1.msra.mxu0 %v180
    %207 = vmatprep.subr.mxu0 0.0
    %208 = vmatpush1.msra.mxu0 %v181
    %209 = vmatprep.subr.mxu0 0.0
    %210 = vmatpush1.msra.mxu0 %v182
    %211 = vmatprep.subr.mxu0 0.0
    %212 = vmatpush1.msra.mxu0 %v183
    %213 = vmatprep.subr.mxu0 0.0
    %214 = vmatpush1.msra.mxu0 %v184
    %215 = vmatprep.subr.mxu0 0.0
    %216 = vmatpush1.msra.mxu0 %v185
    %217 = vmatprep.subr.mxu0 0.0
    %218 = vmatpush1.msra.mxu0 %v186
    %219 = vmatprep.subr.mxu0 0.0
    %220 = vmatpush1.msra.mxu0 %v187
    %221 = vmatprep.subr.mxu0 0.0
    %222 = vmatpush1.msra.mxu0 %v188
    %223 = vmatprep.subr.mxu0 0.0
    %224 = vmatpush1.msra.mxu0 %v189
    %225 = vmatprep.subr.mxu0 0.0
    %226 = vmatpush1.msra.mxu0 %v190
    %227 = vmatprep.subr.mxu0 0.0
    %228 = vmatpush1.msra.mxu0 %v191
    %229 = vmatprep.subr.mxu0 0.0
    %230 = vmatpush1.msra.mxu0 %v192
    %231 = vmatprep.subr.mxu0 0.0
    %232 = vmatpush1.msra.mxu0 %v193
    %233 = vmatprep.subr.mxu0 0.0
    %234 = vmatpush1.msra.mxu0 0.0
    %235 = vmatprep.subr.mxu0 0.0
    %236 = vmatpush1.msra.mxu0 0.0
    %237 = vmatprep.subr.mxu0 0.0
    %238 = vmatpush1.msra.mxu0 0.0
    %239 = vmatprep.subr.mxu0 0.0
    %240 = vmatpush1.msra.mxu0 0.0
    %241 = vmatprep.subr.mxu0 0.0
    %242 = vmatpush1.msra.mxu0 0.0
    %243 = vmatprep.subr.mxu0 0.0
    %244 = vmatpush1.msra.mxu0 0.0
    %245 = vmatprep.subr.mxu0 0.0
    %246 = vmatpush1.msra.mxu0 0.0
    %247 = vmatprep.subr.mxu0 0.0
    %248 = vmatpush1.msra.mxu0 0.0
    %249 = vmatprep.subr.mxu0 0.0
    %250 = vmatpush1.msra.mxu0 0.0
    %251 = vmatprep.subr.mxu0 0.0
    %252 = vmatpush1.msra.mxu0 0.0
    %253 = vmatprep.subr.mxu0 0.0
    %254 = vmatpush1.msra.mxu0 0.0
    %255 = vmatprep.subr.mxu0 0.0
    %256 = vmatpush1.msra.mxu0 0.0
    %257 = vmatprep.subr.mxu0 0.0
    %258 = vmatpush1.msra.mxu0 0.0
    %259 = vmatprep.subr.mxu0 0.0
    %260 = vmatpush1.msra.mxu0 0.0
    %261 = vmatprep.subr.mxu0 0.0
    %262 = vmatpush1.msra.mxu0 0.0
    %263 = vmatprep.subr.mxu0 0.0
    %264 = vmatpush1.msra.mxu0 0.0
    %265 = vmatprep.mubr.f32.mxu0 0.0
    %266 = vmatmul.mubr.f32.gmra.mrb[0].mxu0 %v177
    %v267 = vpop.f32.mrb[0].mxu0
    %v268 = vadd.f32 %v199, %v267
    %v269 = vpop.f32.mrb[0].mxu0
    %270 = vdwg.mxu0
    %v271 = vtanh.pop %v268
    %272 = vst [vmem:[#allocation11] sm:$0xff] %v271
    // Predicated region
    $region42: #{tpu_custom_call.1} parent=1 // pred_check
      _
    $region43: #{tpu_custom_call.1} parent=1 // pred_check_branch
      %274 = sbr.rel (0) target = $region45
    $region44: #{tpu_custom_call.1} parent=1 // pred_region
      %s276 = ssub.s32 128, 128
      %277 = vsyncadd [#allocation4], %s276
      %s279 = sshll.u32 [#allocation11], 4
      %s280 = int_to_ptr.vmem [resolvable:$true] %s279
      %282 = dma.vmem_to_hbm [thread:$0]  %s280, 128, %s5, [#allocation4]
    $region45: #{tpu_custom_call.1} parent=1 // pred_fallthru
      _
    // Predicated region
    $region46: #{tpu_custom_call.1} parent=1 // pred_check
      _
    $region47: #{tpu_custom_call.1} parent=1 // pred_check_branch
      %284 = sbr.rel (0) target = $region49
    $region48: #{tpu_custom_call.1} parent=1 // pred_region
      %285 = dma.done [#allocation4], 128
    $region49: #{tpu_custom_call.1} parent=1 // pred_fallthru
      _
    %286 = vsyncpa [#allocation3], 1
    %287 = vsyncpa [#allocation6], 1
    %288 = vsyncpa [#allocation9], 1
    %289 = vsyncpa [#allocation4], 1

// kernel: tpu_custom_call.1
$region0: #{tpu_custom_call.1}
  #allocation0 [shape = 'u32[]', space=smem, size = 0x4, offset = 0x4, fixed_abs, tag = 'smem constant byte address 0x4 - core index']
  #allocation1 [shape = 'u32[144,128]{1,0:T(1,128)}', space=vmem, size = 0x12000, scoped, tag = 'internal scratch']
  %s0 = inlined_call_operand.hbm [shape: f32[8,128], index: 0, kind: input, shape index: {}]
  %s1 = inlined_call_operand.hbm [shape: f32[128,128], index: 1, kind: input, shape index: {}]
  %s2 = inlined_call_operand.hbm [shape: f32[1,128], index: 2, kind: input, shape index: {}]
  %s3 = inlined_call_operand.hbm [shape: f32[128,128], index: 3, kind: input, shape index: {}]
  %s4 = inlined_call_operand.hbm [shape: f32[1,128], index: 4, kind: input, shape index: {}]
  %s5 = inlined_call_operand.hbm [shape: f32[8,128], index: 5, kind: output, shape index: {}]
  %s6 = sld [smem:[#allocation0]]
  $region50: #{tpu_custom_call.1} parent=0
    _
  %s8 = ssub.s32 1, %s6
  %s9 = scalar_select 0, %s8, %s6
  $region1: #{tpu_custom_call.1} parent=0
    #allocation2 [shape = 'u8[4096]{0}', space=vmem, size = 0x1000, scoped, tag = 'input window, operand 0, single buffered']
    #allocation3 [shape = 's32[1]{0}', space=sflag, size = 0x4, scoped, tag = 'scoped memory for tpu_custom_call.1']
    #allocation4 [shape = 's32[1]{0}', space=sflag, size = 0x4, scoped, tag = 'scoped memory for tpu_custom_call.1']
    #allocation5 [shape = 'u8[65536]{0}', space=vmem, size = 0x10000, scoped, tag = 'input window, operand 1, single buffered']
    #allocation6 [shape = 's32[1]{0}', space=sflag, size = 0x4, scoped, tag = 'scoped memory for tpu_custom_call.1']
    #allocation7 [shape = 'u8[512]{0}', space=vmem, size = 0x400, scoped, tag = 'input window, operand 2, single buffered']
    #allocation8 [shape = 'u8[65536]{0}', space=vmem, size = 0x10000, scoped, tag = 'input window, operand 3, single buffered']
    #allocation9 [shape = 's32[1]{0}', space=sflag, size = 0x4, scoped, tag = 'scoped memory for tpu_custom_call.1']
    #allocation10 [shape = 'u8[512]{0}', space=vmem, size = 0x400, scoped, tag = 'input window, operand 4, single buffered']
    #allocation11 [shape = 'u8[4096]{0}', space=vmem, size = 0x1000, scoped, tag = 'output window, operand 0, single buffered']
    %10 = vsyncpa [#allocation3], 0
    %11 = vsyncpa [#allocation6], 0
    %12 = vsyncpa [#allocation9], 0
    %13 = vsyncpa [#allocation4], 0
    // Predicated region
    $region2: #{tpu_custom_call.1} parent=1 // pred_check
      _
    $region3: #{tpu_custom_call.1} parent=1 // pred_check_branch
      %15 = sbr.rel (0) target = $region5
    $region4: #{tpu_custom_call.1} parent=1 // pred_region
      %s17 = ssub.s32 128, 128
      %18 = vsyncadd [#allocation3], %s17
      %s20 = sshll.u32 [#allocation2], 4
      %s21 = int_to_ptr.vmem [resolvable:$true] %s20
      %23 = dma.hbm_to_vmem [thread:$0]  %s0, 128, %s21, [#allocation3]
    $region5: #{tpu_custom_call.1} parent=1 // pred_fallthru
      _
    // Predicated region
    $region6: #{tpu_custom_call.1} parent=1 // pred_check
      _
    $region7: #{tpu_custom_call.1} parent=1 // pred_check_branch
      %25 = sbr.rel (0) target = $region9
    $region8: #{tpu_custom_call.1} parent=1 // pred_region
      %s27 = ssub.s32 2048, 2048
      %28 = vsyncadd [#allocation6], %s27
      %s29 = sshll.u32 [#allocation5], 4
      %s30 = int_to_ptr.vmem [resolvable:$true] %s29
      %35 = dma.hbm_to_vmem [thread:$0]  %s1, 2048, %s30, [#allocation6], 128, 128, 8
    $region9: #{tpu_custom_call.1} parent=1 // pred_fallthru
      _
    // Predicated region
    $region10: #{tpu_custom_call.1} parent=1 // pred_check
      _
    $region11: #{tpu_custom_call.1} parent=1 // pred_check_branch
      %37 = sbr.rel (0) target = $region13
    $region12: #{tpu_custom_call.1} parent=1 // pred_region
      %s39 = ssub.s32 16, 16
      %40 = vsyncadd [#allocation6], %s39
      %s42 = sshll.u32 [#allocation7], 4
      %s43 = int_to_ptr.vmem [resolvable:$true] %s42
      %45 = dma.hbm_to_vmem [thread:$0]  %s2, 16, %s43, [#allocation6]
    $region13: #{tpu_custom_call.1} parent=1 // pred_fallthru
      _
    // Predicated region
    $region14: #{tpu_custom_call.1} parent=1 // pred_check
      _
    $region15: #{tpu_custom_call.1} parent=1 // pred_check_branch
      %47 = sbr.rel (0) target = $region17
    $region16: #{tpu_custom_call.1} parent=1 // pred_region
      %s49 = ssub.s32 2048, 2048
      %50 = vsyncadd [#allocation9], %s49
      %s51 = sshll.u32 [#allocation8], 4
      %s52 = int_to_ptr.vmem [resolvable:$true] %s51
      %57 = dma.hbm_to_vmem [thread:$0]  %s3, 2048, %s52, [#allocation9], 128, 128, 8
    $region17: #{tpu_custom_call.1} parent=1 // pred_fallthru
      _
    // Predicated region
    $region18: #{tpu_custom_call.1} parent=1 // pred_check
      _
    $region19: #{tpu_custom_call.1} parent=1 // pred_check_branch
      %59 = sbr.rel (0) target = $region21
    $region20: #{tpu_custom_call.1} parent=1 // pred_region
      %s61 = ssub.s32 16, 16
      %62 = vsyncadd [#allocation9], %s61
      %s64 = sshll.u32 [#allocation10], 4
      %s65 = int_to_ptr.vmem [resolvable:$true] %s64
      %67 = dma.hbm_to_vmem [thread:$0]  %s4, 16, %s65, [#allocation9]
    $region21: #{tpu_custom_call.1} parent=1 // pred_fallthru
      _
    // Predicated region
    $region22: #{tpu_custom_call.1} parent=1 // pred_check
      _
    $region23: #{tpu_custom_call.1} parent=1 // pred_check_branch
      %69 = sbr.rel (0) target = $region25
    $region24: #{tpu_custom_call.1} parent=1 // pred_region
      %70 = dma.done [#allocation3], 128
    $region25: #{tpu_custom_call.1} parent=1 // pred_fallthru
      _
    // Predicated region
    $region26: #{tpu_custom_call.1} parent=1 // pred_check
      _
    $region27: #{tpu_custom_call.1} parent=1 // pred_check_branch
      %72 = sbr.rel (0) target = $region29
    $region28: #{tpu_custom_call.1} parent=1 // pred_region
      %73 = dma.done [#allocation6], 2048
    $region29: #{tpu_custom_call.1} parent=1 // pred_fallthru
      _
    // Predicated region
    $region30: #{tpu_custom_call.1} parent=1 // pred_check
      _
    $region31: #{tpu_custom_call.1} parent=1 // pred_check_branch
      %75 = sbr.rel (0) target = $region33
    $region32: #{tpu_custom_call.1} parent=1 // pred_region
      %76 = dma.done [#allocation6], 16
    $region33: #{tpu_custom_call.1} parent=1 // pred_fallthru
      _
    // Predicated region
    $region34: #{tpu_custom_call.1} parent=1 // pred_check
      _
    $region35: #{tpu_custom_call.1} parent=1 // pred_check_branch
      %78 = sbr.rel (0) target = $region37
    $region36: #{tpu_custom_call.1} parent=1 // pred_region
      %79 = dma.done [#allocation9], 2048
    $region37: #{tpu_custom_call.1} parent=1 // pred_fallthru
      _
    // Predicated region
    $region38: #{tpu_custom_call.1} parent=1 // pred_check
      _
    $region39: #{tpu_custom_call.1} parent=1 // pred_check_branch
      %81 = sbr.rel (0) target = $region41
    $region40: #{tpu_custom_call.1} parent=1 // pred_region
      %82 = dma.done [#allocation9], 16
    $region41: #{tpu_custom_call.1} parent=1 // pred_fallthru
      _
    %v83 = vld [vmem:[#allocation2] sm:$0xff]
    %v84 = vld [vmem:[#allocation5] sm:$0xff]
    %v85 = vld [vmem:[#allocation5 + $0x8] sm:$0xff]
    %v86 = vld [vmem:[#allocation5 + $0x10] sm:$0xff]
    %v87 = vld [vmem:[#allocation5 + $0x18] sm:$0xff]
    %v88 = vld [vmem:[#allocation5 + $0x20] sm:$0xff]
    %v89 = vld [vmem:[#allocation5 + $0x28] sm:$0xff]
    %v90 = vld [vmem:[#allocation5 + $0x30] sm:$0xff]
    %v91 = vld [vmem:[#allocation5 + $0x38] sm:$0xff]
    %v92 = vld [vmem:[#allocation5 + $0x40] sm:$0xff]
    %v93 = vld [vmem:[#allocation5 + $0x48] sm:$0xff]
    %v94 = vld [vmem:[#allocation5 + $0x50] sm:$0xff]
    %v95 = vld [vmem:[#allocation5 + $0x58] sm:$0xff]
    %v96 = vld [vmem:[#allocation5 + $0x60] sm:$0xff]
    %v97 = vld [vmem:[#allocation5 + $0x68] sm:$0xff]
    %v98 = vld [vmem:[#allocation5 + $0x70] sm:$0xff]
    %v99 = vld [vmem:[#allocation5 + $0x78] sm:$0xff]
    %v100 = vld [vmem:[#allocation7] sm:$0x1]
    %v102 = vlaneseq
    %v103 = vshrl.u32 %v102, 7
    %v104 = vsub.s32 0, %v103
    %v105 = vrot.slane %v100, %v104
    %107 = vmatprep.subr.mxu0 0.0
    %108 = vmatpush1.msra.mxu0 %v84
    %109 = vmatprep.subr.mxu0 0.0
    %110 = vmatpush1.msra.mxu0 %v85
    %111 = vmatprep.subr.mxu0 0.0
    %112 = vmatpush1.msra.mxu0 %v86
    %113 = vmatprep.subr.mxu0 0.0
    %114 = vmatpush1.msra.mxu0 %v87
    %115 = vmatprep.subr.mxu0 0.0
    %116 = vmatpush1.msra.mxu0 %v88
    %117 = vmatprep.subr.mxu0 0.0
    %118 = vmatpush1.msra.mxu0 %v89
    %119 = vmatprep.subr.mxu0 0.0
    %120 = vmatpush1.msra.mxu0 %v90
    %121 = vmatprep.subr.mxu0 0.0
    %122 = vmatpush1.msra.mxu0 %v91
    %123 = vmatprep.subr.mxu0 0.0
    %124 = vmatpush1.msra.mxu0 %v92
    %125 = vmatprep.subr.mxu0 0.0
    %126 = vmatpush1.msra.mxu0 %v93
    %127 = vmatprep.subr.mxu0 0.0
    %128 = vmatpush1.msra.mxu0 %v94
    %129 = vmatprep.subr.mxu0 0.0
    %130 = vmatpush1.msra.mxu0 %v95
    %131 = vmatprep.subr.mxu0 0.0
    %132 = vmatpush1.msra.mxu0 %v96
    %133 = vmatprep.subr.mxu0 0.0
    %134 = vmatpush1.msra.mxu0 %v97
    %135 = vmatprep.subr.mxu0 0.0
    %136 = vmatpush1.msra.mxu0 %v98
    %137 = vmatprep.subr.mxu0 0.0
    %138 = vmatpush1.msra.mxu0 %v99
    %139 = vmatprep.subr.mxu0 0.0
    %140 = vmatpush1.msra.mxu0 0.0
    %141 = vmatprep.subr.mxu0 0.0
    %142 = vmatpush1.msra.mxu0 0.0
    %143 = vmatprep.subr.mxu0 0.0
    %144 = vmatpush1.msra.mxu0 0.0
    %145 = vmatprep.subr.mxu0 0.0
    %146 = vmatpush1.msra.mxu0 0.0
    %147 = vmatprep.subr.mxu0 0.0
    %148 = vmatpush1.msra.mxu0 0.0
    %149 = vmatprep.subr.mxu0 0.0
    %150 = vmatpush1.msra.mxu0 0.0
    %151 = vmatprep.subr.mxu0 0.0
    %152 = vmatpush1.msra.mxu0 0.0
    %153 = vmatprep.subr.mxu0 0.0
    %154 = vmatpush1.msra.mxu0 0.0
    %155 = vmatprep.subr.mxu0 0.0
    %156 = vmatpush1.msra.mxu0 0.0
    %157 = vmatprep.subr.mxu0 0.0
    %158 = vmatpush1.msra.mxu0 0.0
    %159 = vmatprep.subr.mxu0 0.0
    %160 = vmatpush1.msra.mxu0 0.0
    %161 = vmatprep.subr.mxu0 0.0
    %162 = vmatpush1.msra.mxu0 0.0
    %163 = vmatprep.subr.mxu0 0.0
    %164 = vmatpush1.msra.mxu0 0.0
    %165 = vmatprep.subr.mxu0 0.0
    %166 = vmatpush1.msra.mxu0 0.0
    %167 = vmatprep.subr.mxu0 0.0
    %168 = vmatpush1.msra.mxu0 0.0
    %169 = vmatprep.subr.mxu0 0.0
    %170 = vmatpush1.msra.mxu0 0.0
    %171 = vmatprep.mubr.f32.mxu0 0.0
    %172 = vmatmul.mubr.f32.gmra.mrb[0].mxu0 %v83
    %v173 = vpop.f32.mrb[0].mxu0
    %v174 = vadd.f32 %v105, %v173
    %v175 = vpop.f32.mrb[0].mxu0
    %176 = vdwg.mxu0
    %v177 = vtanh.pop %v174
    %v178 = vld [vmem:[#allocation8] sm:$0xff]
    %v179 = vld [vmem:[#allocation8 + $0x8] sm:$0xff]
    %v180 = vld [vmem:[#allocation8 + $0x10] sm:$0xff]
    %v181 = vld [vmem:[#allocation8 + $0x18] sm:$0xff]
    %v182 = vld [vmem:[#allocation8 + $0x20] sm:$0xff]
    %v183 = vld [vmem:[#allocation8 + $0x28] sm:$0xff]
    %v184 = vld [vmem:[#allocation8 + $0x30] sm:$0xff]
    %v185 = vld [vmem:[#allocation8 + $0x38] sm:$0xff]
    %v186 = vld [vmem:[#allocation8 + $0x40] sm:$0xff]
    %v187 = vld [vmem:[#allocation8 + $0x48] sm:$0xff]
    %v188 = vld [vmem:[#allocation8 + $0x50] sm:$0xff]
    %v189 = vld [vmem:[#allocation8 + $0x58] sm:$0xff]
    %v190 = vld [vmem:[#allocation8 + $0x60] sm:$0xff]
    %v191 = vld [vmem:[#allocation8 + $0x68] sm:$0xff]
    %v192 = vld [vmem:[#allocation8 + $0x70] sm:$0xff]
    %v193 = vld [vmem:[#allocation8 + $0x78] sm:$0xff]
    %v194 = vld [vmem:[#allocation10] sm:$0x1]
    %v196 = vlaneseq
    %v197 = vshrl.u32 %v196, 7
    %v198 = vsub.s32 0, %v197
    %v199 = vrot.slane %v194, %v198
    %201 = vmatprep.subr.mxu0 0.0
    %202 = vmatpush1.msra.mxu0 %v178
    %203 = vmatprep.subr.mxu0 0.0
    %204 = vmatpush1.msra.mxu0 %v179
    %205 = vmatprep.subr.mxu0 0.0
    %206 = vmatpush1.msra.mxu0 %v180
    %207 = vmatprep.subr.mxu0 0.0
    %208 = vmatpush1.msra.mxu0 %v181
    %209 = vmatprep.subr.mxu0 0.0
    %210 = vmatpush1.msra.mxu0 %v182
    %211 = vmatprep.subr.mxu0 0.0
    %212 = vmatpush1.msra.mxu0 %v183
    %213 = vmatprep.subr.mxu0 0.0
    %214 = vmatpush1.msra.mxu0 %v184
    %215 = vmatprep.subr.mxu0 0.0
    %216 = vmatpush1.msra.mxu0 %v185
    %217 = vmatprep.subr.mxu0 0.0
    %218 = vmatpush1.msra.mxu0 %v186
    %219 = vmatprep.subr.mxu0 0.0
    %220 = vmatpush1.msra.mxu0 %v187
    %221 = vmatprep.subr.mxu0 0.0
    %222 = vmatpush1.msra.mxu0 %v188
    %223 = vmatprep.subr.mxu0 0.0
    %224 = vmatpush1.msra.mxu0 %v189
    %225 = vmatprep.subr.mxu0 0.0
    %226 = vmatpush1.msra.mxu0 %v190
    %227 = vmatprep.subr.mxu0 0.0
    %228 = vmatpush1.msra.mxu0 %v191
    %229 = vmatprep.subr.mxu0 0.0
    %230 = vmatpush1.msra.mxu0 %v192
    %231 = vmatprep.subr.mxu0 0.0
    %232 = vmatpush1.msra.mxu0 %v193
    %233 = vmatprep.subr.mxu0 0.0
    %234 = vmatpush1.msra.mxu0 0.0
    %235 = vmatprep.subr.mxu0 0.0
    %236 = vmatpush1.msra.mxu0 0.0
    %237 = vmatprep.subr.mxu0 0.0
    %238 = vmatpush1.msra.mxu0 0.0
    %239 = vmatprep.subr.mxu0 0.0
    %240 = vmatpush1.msra.mxu0 0.0
    %241 = vmatprep.subr.mxu0 0.0
    %242 = vmatpush1.msra.mxu0 0.0
    %243 = vmatprep.subr.mxu0 0.0
    %244 = vmatpush1.msra.mxu0 0.0
    %245 = vmatprep.subr.mxu0 0.0
    %246 = vmatpush1.msra.mxu0 0.0
    %247 = vmatprep.subr.mxu0 0.0
    %248 = vmatpush1.msra.mxu0 0.0
    %249 = vmatprep.subr.mxu0 0.0
    %250 = vmatpush1.msra.mxu0 0.0
    %251 = vmatprep.subr.mxu0 0.0
    %252 = vmatpush1.msra.mxu0 0.0
    %253 = vmatprep.subr.mxu0 0.0
    %254 = vmatpush1.msra.mxu0 0.0
    %255 = vmatprep.subr.mxu0 0.0
    %256 = vmatpush1.msra.mxu0 0.0
    %257 = vmatprep.subr.mxu0 0.0
    %258 = vmatpush1.msra.mxu0 0.0
    %259 = vmatprep.subr.mxu0 0.0
    %260 = vmatpush1.msra.mxu0 0.0
    %261 = vmatprep.subr.mxu0 0.0
    %262 = vmatpush1.msra.mxu0 0.0
    %263 = vmatprep.subr.mxu0 0.0
    %264 = vmatpush1.msra.mxu0 0.0
    %265 = vmatprep.mubr.f32.mxu0 0.0
    %266 = vmatmul.mubr.f32.gmra.mrb[0].mxu0 %v177
    %v267 = vpop.f32.mrb[0].mxu0
    %v268 = vadd.f32 %v199, %v267
    %v269 = vpop.f32.mrb[0].mxu0
    %270 = vdwg.mxu0
    %v271 = vtanh.pop %v268
    %272 = vst [vmem:[#allocation11] sm:$0xff] %v271
    // Predicated region
    $region42: #{tpu_custom_call.1} parent=1 // pred_check
      _
    $region43: #{tpu_custom_call.1} parent=1 // pred_check_branch
      %274 = sbr.rel (0) target = $region45
    $region44: #{tpu_custom_call.1} parent=1 // pred_region
      %s276 = ssub.s32 128, 128
      %277 = vsyncadd [#allocation4], %s276
      %s279 = sshll.u32 [#allocation11], 4
      %s280 = int_to_ptr.vmem [resolvable:$true] %s279
      %282 = dma.vmem_to_hbm [thread:$0]  %s280, 128, %s5, [#allocation4]
    $region45: #{tpu_custom_call.1} parent=1 // pred_fallthru
      _
    // Predicated region
    $region46: #{tpu_custom_call.1} parent=1 // pred_check
      _
    $region47: #{tpu_custom_call.1} parent=1 // pred_check_branch
      %284 = sbr.rel (0) target = $region49
    $region48: #{tpu_custom_call.1} parent=1 // pred_region
      %285 = dma.done [#allocation4], 128
    $region49: #{tpu_custom_call.1} parent=1 // pred_fallthru
      _
    %286 = vsyncpa [#allocation3], 1
    %287 = vsyncpa [#allocation6], 1
    %288 = vsyncpa [#allocation9], 1
    %289 = vsyncpa [#allocation4], 1

</llo_original>
